<compile_context>
chip_gen: v7x
topology: tpu7x:2x2x1
jax: 0.10.0
libtpu: 0.0.40
codegen_flags: <defaults>
</compile_context>

<pallas_src>
import jax
import jax.numpy as jnp
from jax.experimental import pallas as pl
from jax.experimental.pallas import tpu as pltpu


def _seq_label_kernel(x_ref, w1_ref, b1_ref, wa_ref, ba_ref, o_ref):
    # x_ref:  (TM, H)    bf16 input row tile (B*L flattened)
    # w1_ref: (H, H2)    bf16 first-linear weight, (in, out) layout
    # b1_ref: (1, H2)    f32 first-linear bias
    # wa_ref: (H2, Tp)   bf16 folded linear_a weight, lane-padded to Tp
    # ba_ref: (1, Tp)    f32 linear_a bias, lane-padded to Tp
    # o_ref:  (TM, Tp)   output row tile (lane-dense)
    t = jnp.dot(x_ref[...], w1_ref[...], preferred_element_type=jnp.float32)
    t = jnp.maximum(t + b1_ref[...], 0.0)             # ReLU (dropout = identity)
    y = jnp.dot(t.astype(wa_ref.dtype), wa_ref[...],
                preferred_element_type=jnp.float32) + ba_ref[...]
    o_ref[...] = y.astype(o_ref.dtype)


def _round_up(x: int, m: int) -> int:
    return (x + m - 1) // m * m


def _choose_row_tile(n_rows: int, max_tile: int = 512) -> int:
    """Row-tile over the flattened (B*L) axis.

    512 rows (multiple of 256 -> full MXU M occupancy on v6e/v7x) when there
    is enough work; otherwise a multiple of 16 (bf16 sublane packing).
    """
    if n_rows >= max_tile:
        return max_tile
    return min(_round_up(n_rows, 16), max_tile)


def customize_sequence_label_for_ao(input_features, params, tag_size):
    """input_features: (B, L, H) -> (sub_output, obj_output), each (B, L, tag_size)."""
    x = input_features
    B, L, H = x.shape
    H2 = H // 2
    T = tag_size
    Tp = _round_up(max(T, 128), 128)          # lane-dense output width
    out_dtype = x.dtype
    out_bytes = jnp.dtype(out_dtype).itemsize

    W_lin, b_lin = params["linear"]           # (H2, H), (H2,)  PyTorch layout
    W_a, b_a = params["linear_a"]             # (T, H),  (T,)

    # --- one-time weight prep in the wrapper (tiny) -------------------------
    # Fold cat([t, t], -1) @ Wa^T  ->  t @ (Wa^T[:H2] + Wa^T[H2:]).
    wa_t = jnp.asarray(W_a, jnp.float32).T                    # (H, T)
    wa_eff = wa_t[:H2] + wa_t[H2:]                            # (H2, T)

    w1 = jnp.asarray(W_lin, jnp.float32).T.astype(jnp.bfloat16)      # (H, H2)
    wa_pad = (jnp.zeros((H2, Tp), jnp.float32)
              .at[:, :T].set(wa_eff).astype(jnp.bfloat16))           # (H2, Tp)
    b1 = jnp.asarray(b_lin, jnp.float32).reshape(1, H2)              # (1, H2)
    ba_pad = (jnp.zeros((1, Tp), jnp.float32)
              .at[:, :T].set(jnp.asarray(b_a, jnp.float32).reshape(1, T)))

    # --- flatten (B, L) and tile ---------------------------------------------
    N = B * L
    x2 = x.reshape(N, H).astype(jnp.bfloat16)
    TM = _choose_row_tile(N)
    grid = (pl.cdiv(N, TM),)

    # --- explicit VMEM budget (double-buffered x/out, single-buffered weights)
    vmem_need = (
        2 * TM * H * 2                      # x tile, bf16, 2 buffers
        + 2 * TM * Tp * out_bytes           # out tile, 2 buffers
        + (H * H2 + H2 * Tp) * 2            # bf16 weights, single-buffered
        + (H2 + Tp) * 4                     # f32 biases
        + TM * (H2 + Tp) * 4                # f32 intermediates
    )
    vmem_limit = int(min(max(2 * vmem_need + (2 << 20), 16 << 20), 64 << 20))

    cost = pl.CostEstimate(
        flops=2 * N * H * H2 + 2 * N * H2 * Tp,
        transcendentals=0,
        bytes_accessed=(N * H * 2 + H * H2 * 2 + H2 * Tp * 2
                        + (H2 + Tp) * 4 + N * Tp * out_bytes),
    )

    out_padded = pl.pallas_call(
        _seq_label_kernel,
        out_shape=jax.ShapeDtypeStruct((N, Tp), out_dtype),
        grid_spec=pltpu.PrefetchScalarGridSpec(
            num_scalar_prefetch=0,
            grid=grid,
            in_specs=[
                pl.BlockSpec((TM, H), lambda i: (i, 0)),
                pl.BlockSpec((H, H2), lambda i: (0, 0),
                             pipeline_mode=pl.Buffered(1)),
                pl.BlockSpec((1, H2), lambda i: (0, 0),
                             pipeline_mode=pl.Buffered(1)),
                pl.BlockSpec((H2, Tp), lambda i: (0, 0),
                             pipeline_mode=pl.Buffered(1)),
                pl.BlockSpec((1, Tp), lambda i: (0, 0),
                             pipeline_mode=pl.Buffered(1)),
            ],
            out_specs=pl.BlockSpec((TM, Tp), lambda i: (i, 0)),
        ),
        compiler_params=pltpu.CompilerParams(
            dimension_semantics=("parallel",),
            vmem_limit_bytes=vmem_limit,
        ),
        cost_estimate=cost,
    )(x2, w1, b1, wa_pad, ba_pad)

    sub_output = out_padded[:, :T].reshape(B, L, T)
    # Per the module's forward (dropout = identity, linear_a reused for both
    # branches), obj_output is numerically identical to sub_output.
    obj_output = sub_output
    return sub_output, obj_output


def customize_sequence_label_for_ao_ref(input_features, params):
    """Pure-JAX reference mirroring the PyTorch forward line-by-line (eval mode)."""
    x = input_features
    W_lin, b_lin = params["linear"]
    W_sub, b_sub = params["hidden2tag_sub"]
    W_obj, b_obj = params["hidden2tag_obj"]
    W_a, b_a = params["linear_a"]

    features_tmp = jax.nn.relu(x @ W_lin.T + b_lin)        # dropout = identity
    _ = x @ W_sub.T + b_sub                                # computed, then overwritten
    features_tmp_a = features_tmp
    _ = x @ W_obj.T + b_obj                                # computed, then overwritten
    features_tmp_o = features_tmp

    features_for_a = jnp.concatenate([features_tmp, features_tmp_a], -1)
    features_for_o = jnp.concatenate([features_tmp, features_tmp_o], -1)
    sub_output = features_for_a @ W_a.T + b_a
    obj_output = features_for_o @ W_a.T + b_a              # linear_a used for both
    return sub_output, obj_output


if __name__ == "__main__":
    key = jax.random.PRNGKey(0)
    keys = jax.random.split(key, 11)

    B, L, H = 2, 8, 32          # batch, seq_len, hidden_size
    H2 = H // 2
    TAG = 8                     # tag_size

    def _linear(kw, kb, out_f, in_f, scale=0.1):
        return (scale * jax.random.normal(kw, (out_f, in_f), dtype=jnp.float32),
                scale * jax.random.normal(kb, (out_f,), dtype=jnp.float32))

    params = {
        "linear": _linear(keys[0], keys[1], H2, H),
        "hidden2tag_sub": _linear(keys[2], keys[3], H2, H),   # unused in forward output
        "hidden2tag_obj": _linear(keys[4], keys[5], H2, H),   # unused in forward output
        "linear_a": _linear(keys[6], keys[7], TAG, H),
        "linear_o": _linear(keys[8], keys[9], TAG, H),        # never used by the module
    }

    x = jax.random.normal(keys[10], (B, L, H), dtype=jnp.float32)

    sub_out, obj_out = customize_sequence_label_for_ao(x, params, TAG)
    sub_out = jax.block_until_ready(sub_out)
    obj_out = jax.block_until_ready(obj_out)

    sub_ref, obj_ref = customize_sequence_label_for_ao_ref(x, params)

    assert sub_out.shape == (B, L, TAG), sub_out.shape
    assert obj_out.shape == (B, L, TAG), obj_out.shape
    # bf16 MXU feeds with f32 accumulation -> loosened tolerances vs f32 ref.
    assert jnp.allclose(sub_out, sub_ref, atol=2e-2, rtol=2e-2), "sub_output mismatch"
    assert jnp.allclose(obj_out, obj_ref, atol=2e-2, rtol=2e-2), "obj_output mismatch"

    print("KERNEL_OK")
</pallas_src>

<mosaic_0001>
module attributes {stable_mosaic.version = 11 : i64} {
  func.func @_seq_label_kernel(%arg0: i32, %arg1: memref<16x32xbf16, #tpu.memory_space<vmem>>, %arg2: memref<32x16xbf16, #tpu.memory_space<vmem>>, %arg3: memref<1x16xf32, #tpu.memory_space<vmem>>, %arg4: memref<16x128xbf16, #tpu.memory_space<vmem>>, %arg5: memref<1x128xf32, #tpu.memory_space<vmem>>, %arg6: memref<16x128xf32, #tpu.memory_space<vmem>>) attributes {dimension_semantics = [#tpu.dimension_semantics<parallel>], iteration_bounds = array<i64: 1>, scalar_prefetch = 0 : i64, scratch_operands = 0 : i64, tpu.core_type = #tpu.core_type<tc>, window_params = [{transform_indices = @transform_0, window_bounds = array<i64: 16, 32>}, {pipeline_mode = #tpu.pipeline_mode<synchronous>, transform_indices = @transform_1, window_bounds = array<i64: 32, 16>}, {pipeline_mode = #tpu.pipeline_mode<synchronous>, transform_indices = @transform_2, window_bounds = array<i64: 1, 16>}, {pipeline_mode = #tpu.pipeline_mode<synchronous>, transform_indices = @transform_3, window_bounds = array<i64: 16, 128>}, {pipeline_mode = #tpu.pipeline_mode<synchronous>, transform_indices = @transform_4, window_bounds = array<i64: 1, 128>}, {transform_indices = @transform_5, window_bounds = array<i64: 16, 128>}]} {
    %c0 = arith.constant 0 : index
    %c0_0 = arith.constant 0 : index
    %0 = vector.load %arg1[%c0, %c0_0] : memref<16x32xbf16, #tpu.memory_space<vmem>>, vector<16x32xbf16>
    %c0_1 = arith.constant 0 : index
    %c0_2 = arith.constant 0 : index
    %1 = vector.load %arg2[%c0_1, %c0_2] : memref<32x16xbf16, #tpu.memory_space<vmem>>, vector<32x16xbf16>
    %cst = arith.constant dense<0.000000e+00> : vector<16x16xf32>
    %2 = tpu.matmul %0, %1, %cst {dimension_numbers = #tpu.dot_dimension_numbers<[1], [0], [0], [1], [0, 0, 1, 1], [], []>} : vector<16x32xbf16>, vector<32x16xbf16>, vector<16x16xf32> -> vector<16x16xf32>
    %c0_3 = arith.constant 0 : index
    %c0_4 = arith.constant 0 : index
    %3 = vector.load %arg3[%c0_3, %c0_4] : memref<1x16xf32, #tpu.memory_space<vmem>>, vector<1x16xf32>
    %4 = vector.broadcast %3 : vector<1x16xf32> to vector<16x16xf32>
    %5 = arith.addf %2, %4 : vector<16x16xf32>
    %cst_5 = arith.constant 0.000000e+00 : f32
    %6 = vector.broadcast %cst_5 : f32 to vector<16x16xf32>
    %7 = arith.maximumf %5, %6 : vector<16x16xf32>
    %8 = arith.truncf %7 : vector<16x16xf32> to vector<16x16xbf16>
    %c0_6 = arith.constant 0 : index
    %c0_7 = arith.constant 0 : index
    %9 = vector.load %arg4[%c0_6, %c0_7] : memref<16x128xbf16, #tpu.memory_space<vmem>>, vector<16x128xbf16>
    %cst_8 = arith.constant dense<0.000000e+00> : vector<16x128xf32>
    %10 = tpu.matmul %8, %9, %cst_8 {dimension_numbers = #tpu.dot_dimension_numbers<[1], [0], [0], [1], [0, 0, 1, 1], [], []>} : vector<16x16xbf16>, vector<16x128xbf16>, vector<16x128xf32> -> vector<16x128xf32>
    %c0_9 = arith.constant 0 : index
    %c0_10 = arith.constant 0 : index
    %11 = vector.load %arg5[%c0_9, %c0_10] : memref<1x128xf32, #tpu.memory_space<vmem>>, vector<1x128xf32>
    %12 = vector.broadcast %11 : vector<1x128xf32> to vector<16x128xf32>
    %13 = arith.addf %10, %12 : vector<16x128xf32>
    %c0_11 = arith.constant 0 : index
    %c0_12 = arith.constant 0 : index
    %14 = vector.load %arg6[%c0_11, %c0_12] : memref<16x128xf32, #tpu.memory_space<vmem>>, vector<16x128xf32>
    tpu.vector_store %arg6[%c0_11, %c0_12], %13 {strides = array<i32>} : memref<16x128xf32, #tpu.memory_space<vmem>>, vector<16x128xf32>,
    return
  }
  func.func @transform_0(%arg0: i32) -> (i32, i32) {
    %c0_i32 = arith.constant 0 : i32
    %c0_i32_0 = arith.constant 0 : i32
    return %arg0, %c0_i32 : i32, i32
  }
  func.func @transform_1(%arg0: i32) -> (i32, i32) {
    %c0_i32 = arith.constant 0 : i32
    %c0_i32_0 = arith.constant 0 : i32
    %c0_i32_1 = arith.constant 0 : i32
    return %c0_i32, %c0_i32_0 : i32, i32
  }
  func.func @transform_2(%arg0: i32) -> (i32, i32) {
    %c0_i32 = arith.constant 0 : i32
    %c0_i32_0 = arith.constant 0 : i32
    %c0_i32_1 = arith.constant 0 : i32
    return %c0_i32, %c0_i32_0 : i32, i32
  }
  func.func @transform_3(%arg0: i32) -> (i32, i32) {
    %c0_i32 = arith.constant 0 : i32
    %c0_i32_0 = arith.constant 0 : i32
    %c0_i32_1 = arith.constant 0 : i32
    return %c0_i32, %c0_i32_0 : i32, i32
  }
  func.func @transform_4(%arg0: i32) -> (i32, i32) {
    %c0_i32 = arith.constant 0 : i32
    %c0_i32_0 = arith.constant 0 : i32
    %c0_i32_1 = arith.constant 0 : i32
    return %c0_i32, %c0_i32_0 : i32, i32
  }
  func.func @transform_5(%arg0: i32) -> (i32, i32) {
    %c0_i32 = arith.constant 0 : i32
    %c0_i32_0 = arith.constant 0 : i32
    return %arg0, %c0_i32 : i32, i32
  }
}

</mosaic_0001>

<llo_original>
// kernel: tpu_custom_call.1
$region0: #{tpu_custom_call.1}
  #allocation0 [shape = 'u32[]', space=smem, size = 0x4, offset = 0x4, fixed_abs, tag = 'smem constant byte address 0x4 - core index']
  #allocation1 [shape = 'u32[144,128]{1,0:T(1,128)}', space=vmem, size = 0x12000, scoped, tag = 'internal scratch']
  %s0 = inlined_call_operand.vmem [shape: bf16[16,32], index: 0, kind: input, shape index: {}]
  %s1 = inlined_call_operand.vmem [shape: bf16[32,16], index: 1, kind: input, shape index: {}]
  %s2 = inlined_call_operand.vmem [shape: f32[1,16], index: 2, kind: input, shape index: {}]
  %s3 = inlined_call_operand.vmem [shape: bf16[16,128], index: 3, kind: input, shape index: {}]
  %s4 = inlined_call_operand.vmem [shape: f32[1,128], index: 4, kind: input, shape index: {}]
  %s5 = inlined_call_operand.hbm [shape: f32[16,128], index: 5, kind: output, shape index: {}]
  %s6 = sld [smem:[#allocation0]]
  $region30: #{tpu_custom_call.1} parent=0
    _
  %s8 = ssub.s32 1, %s6
  %s9 = scalar_select 0, %s8, %s6
  $region1: #{tpu_custom_call.1} parent=0
    #allocation2 [shape = 'u8[8192]{0}', space=vmem, size = 0x2000, scoped, tag = 'output window, operand 0, single buffered']
    #allocation3 [shape = 's32[1]{0}', space=sflag, size = 0x4, scoped, tag = 'scoped memory for tpu_custom_call.1']
    %10 = vsyncpa [#allocation3], 0
    // Predicated region
    $region2: #{tpu_custom_call.1} parent=1 // pred_check
      _
    $region3: #{tpu_custom_call.1} parent=1 // pred_check_branch
      %12 = sbr.rel (0) target = $region5
    $region4: #{tpu_custom_call.1} parent=1 // pred_region
      _
    $region5: #{tpu_custom_call.1} parent=1 // pred_fallthru
      _
    // Predicated region
    $region6: #{tpu_custom_call.1} parent=1 // pred_check
      _
    $region7: #{tpu_custom_call.1} parent=1 // pred_check_branch
      %14 = sbr.rel (0) target = $region9
    $region8: #{tpu_custom_call.1} parent=1 // pred_region
      _
    $region9: #{tpu_custom_call.1} parent=1 // pred_fallthru
      _
    // Predicated region
    $region10: #{tpu_custom_call.1} parent=1 // pred_check
      _
    $region11: #{tpu_custom_call.1} parent=1 // pred_check_branch
      %16 = sbr.rel (0) target = $region13
    $region12: #{tpu_custom_call.1} parent=1 // pred_region
      _
    $region13: #{tpu_custom_call.1} parent=1 // pred_fallthru
      _
    // Predicated region
    $region14: #{tpu_custom_call.1} parent=1 // pred_check
      _
    $region15: #{tpu_custom_call.1} parent=1 // pred_check_branch
      %18 = sbr.rel (0) target = $region17
    $region16: #{tpu_custom_call.1} parent=1 // pred_region
      _
    $region17: #{tpu_custom_call.1} parent=1 // pred_fallthru
      _
    // Predicated region
    $region18: #{tpu_custom_call.1} parent=1 // pred_check
      _
    $region19: #{tpu_custom_call.1} parent=1 // pred_check_branch
      %20 = sbr.rel (0) target = $region21
    $region20: #{tpu_custom_call.1} parent=1 // pred_region
      _
    $region21: #{tpu_custom_call.1} parent=1 // pred_fallthru
      _
    %v22 = vld [vmem:[%s0] sm:$0xf]
    %v23 = vld [vmem:[%s0 + $0x4] sm:$0xf]
    %v24 = vld [vmem:[%s1] sm:$0xf]
    %v25 = vld [vmem:[%s1 + $0x4] sm:$0xf]
    %v26 = vld [vmem:[%s1 + $0x8] sm:$0xf]
    %v27 = vld [vmem:[%s1 + $0xc] sm:$0xf]
    %v28 = vld [vmem:[%s2] sm:$0x1]
    %v30 = vlaneseq
    %v31 = vshrl.u32 %v30, 7
    %v32 = vsub.s32 0, %v31
    %v33 = vrot.slane %v28, %v32
    %v37 = vunpack.c.l.b16 %v22
    %v38 = vunpack.c.l.b16 %v23
    %v39 = vpack.c.b16 %v38, %v37
    %v44 = vunpack.c.l.b16 %v24
    %v45 = vunpack.c.l.b16 %v25
    %v46 = vunpack.c.l.b16 %v26
    %v47 = vunpack.c.l.b16 %v27
    %v48 = vpack.c.b16 %v45, %v44
    %v49 = vpack.c.b16 %v47, %v46
    %vm52 = vcmask 261120
    %v54 = vsel %vm52, %v39, 0
    %56 = vmatprep.subr.bf16.mxu0 0
    %57 = vmatpush1.bf16.msra.mxu0 %v48
    %58 = vmatprep.subr.bf16.mxu0 0
    %59 = vmatpush1.bf16.msra.mxu0 %v49
    %60 = vmatprep.subr.bf16.mxu0 0
    %61 = vmatpush1.bf16.msra.mxu0 0
    %62 = vmatprep.subr.bf16.mxu0 0
    %63 = vmatpush1.bf16.msra.mxu0 0
    %64 = vmatprep.subr.bf16.mxu0 0
    %65 = vmatpush1.bf16.msra.mxu0 0
    %66 = vmatprep.subr.bf16.mxu0 0
    %67 = vmatpush1.bf16.msra.mxu0 0
    %68 = vmatprep.subr.bf16.mxu0 0
    %69 = vmatpush1.bf16.msra.mxu0 0
    %70 = vmatprep.subr.bf16.mxu0 0
    %71 = vmatpush1.bf16.msra.mxu0 0
    %72 = vmatprep.subr.bf16.mxu0 0
    %73 = vmatpush1.bf16.msra.mxu0 0
    %74 = vmatprep.subr.bf16.mxu0 0
    %75 = vmatpush1.bf16.msra.mxu0 0
    %76 = vmatprep.subr.bf16.mxu0 0
    %77 = vmatpush1.bf16.msra.mxu0 0
    %78 = vmatprep.subr.bf16.mxu0 0
    %79 = vmatpush1.bf16.msra.mxu0 0
    %80 = vmatprep.subr.bf16.mxu0 0
    %81 = vmatpush1.bf16.msra.mxu0 0
    %82 = vmatprep.subr.bf16.mxu0 0
    %83 = vmatpush1.bf16.msra.mxu0 0
    %84 = vmatprep.subr.bf16.mxu0 0
    %85 = vmatpush1.bf16.msra.mxu0 0
    %86 = vmatprep.subr.bf16.mxu0 0
    %87 = vmatpush1.bf16.msra.mxu0 0
    %88 = vmatprep.mubr.bf16.mxu0 0
    %89 = vmatmul.mubr.bf16.gmra.mrb[0].mxu0 %v54
    %v90 = vpop.f32.mrb[0].mxu0
    %v91 = vadd.f32 %v33, %v90
    %v92 = vpop.f32.mrb[0].mxu0
    %v93 = vpop.f32.mrb[0].mxu0
    %v94 = vadd.f32 %v33, %v93
    %v95 = vpop.f32.mrb[0].mxu0
    %96 = vdwg.mxu0
    %v97 = vmax.f32 %v91, 0.0
    %v98 = vmax.f32 %v94, 0.0
    %v99 = vpack.c.bf16 %v98, %v97
    %v100 = vld [vmem:[%s3] sm:$0xf]
    %v101 = vld [vmem:[%s3 + $0x4] sm:$0xf]
    %v102 = vld [vmem:[%s4] sm:$0x1]
    %v104 = vlaneseq
    %v105 = vshrl.u32 %v104, 7
    %v106 = vsub.s32 0, %v105
    %v107 = vrot.slane %v102, %v106
    %v111 = vunpack.c.l.b16 %v100
    %v112 = vunpack.c.l.b16 %v101
    %v113 = vpack.c.b16 %v112, %v111
    %vm115 = vcmask 130048
    %v117 = vsel %vm115, %v99, 0
    %119 = vmatprep.subr.bf16.mxu0 0
    %120 = vmatpush1.bf16.msra.mxu0 %v113
    %121 = vmatprep.subr.bf16.mxu0 0
    %122 = vmatpush1.bf16.msra.mxu0 0
    %123 = vmatprep.subr.bf16.mxu0 0
    %124 = vmatpush1.bf16.msra.mxu0 0
    %125 = vmatprep.subr.bf16.mxu0 0
    %126 = vmatpush1.bf16.msra.mxu0 0
    %127 = vmatprep.subr.bf16.mxu0 0
    %128 = vmatpush1.bf16.msra.mxu0 0
    %129 = vmatprep.subr.bf16.mxu0 0
    %130 = vmatpush1.bf16.msra.mxu0 0
    %131 = vmatprep.subr.bf16.mxu0 0
    %132 = vmatpush1.bf16.msra.mxu0 0
    %133 = vmatprep.subr.bf16.mxu0 0
    %134 = vmatpush1.bf16.msra.mxu0 0
    %135 = vmatprep.subr.bf16.mxu0 0
    %136 = vmatpush1.bf16.msra.mxu0 0
    %137 = vmatprep.subr.bf16.mxu0 0
    %138 = vmatpush1.bf16.msra.mxu0 0
    %139 = vmatprep.subr.bf16.mxu0 0
    %140 = vmatpush1.bf16.msra.mxu0 0
    %141 = vmatprep.subr.bf16.mxu0 0
    %142 = vmatpush1.bf16.msra.mxu0 0
    %143 = vmatprep.subr.bf16.mxu0 0
    %144 = vmatpush1.bf16.msra.mxu0 0
    %145 = vmatprep.subr.bf16.mxu0 0
    %146 = vmatpush1.bf16.msra.mxu0 0
    %147 = vmatprep.subr.bf16.mxu0 0
    %148 = vmatpush1.bf16.msra.mxu0 0
    %149 = vmatprep.subr.bf16.mxu0 0
    %150 = vmatpush1.bf16.msra.mxu0 0
    %151 = vmatprep.mubr.bf16.mxu0 0
    %152 = vmatmul.mubr.bf16.gmra.mrb[0].mxu0 %v117
    %v153 = vpop.f32.mrb[0].mxu0
    %v154 = vadd.f32 %v107, %v153
    %v155 = vpop.f32.mrb[0].mxu0
    %v156 = vpop.f32.mrb[0].mxu0
    %v157 = vadd.f32 %v107, %v156
    %v158 = vpop.f32.mrb[0].mxu0
    %159 = vdwg.mxu0
    %160 = vst [vmem:[#allocation2] sm:$0xff] %v154
    %161 = vst [vmem:[#allocation2 + $0x8] sm:$0xff] %v157
    // Predicated region
    $region22: #{tpu_custom_call.1} parent=1 // pred_check
      _
    $region23: #{tpu_custom_call.1} parent=1 // pred_check_branch
      %163 = sbr.rel (0) target = $region25
    $region24: #{tpu_custom_call.1} parent=1 // pred_region
      %s165 = ssub.s32 256, 256
      %166 = vsyncadd [#allocation3], %s165
      %s167 = sshll.u32 [#allocation2], 4
      %s168 = int_to_ptr.vmem [resolvable:$true] %s167
      %173 = dma.vmem_to_hbm [thread:$0]  %s168, 256, %s5, [#allocation3], 128, 128, 8
    $region25: #{tpu_custom_call.1} parent=1 // pred_fallthru
      _
    // Predicated region
    $region26: #{tpu_custom_call.1} parent=1 // pred_check
      _
    $region27: #{tpu_custom_call.1} parent=1 // pred_check_branch
      %175 = sbr.rel (0) target = $region29
    $region28: #{tpu_custom_call.1} parent=1 // pred_region
      %176 = dma.done [#allocation3], 256
    $region29: #{tpu_custom_call.1} parent=1 // pred_fallthru
      _
    %177 = vsyncpa [#allocation3], 1

</llo_original>
